<compile_context>
chip_gen: v5e
topology: v5e:2x2
jax: 0.10.0
libtpu: 0.0.40
codegen_flags: <defaults>
</compile_context>

<pallas_src>
import functools

import jax
import jax.numpy as jnp
from jax.experimental import pallas as pl
from jax.experimental.pallas import tpu as pltpu


def _classifier_kernel(x_ref, w_ref, b_ref, o_ref, *, out_features):
    # x_ref: (tb, H) act dtype | w_ref: (H, O_pad) act dtype (pre-transposed,
    # lane-padded) | b_ref: (1, O_pad) f32 | o_ref: (tb, O) act dtype.
    h2y = jnp.dot(x_ref[...], w_ref[...], preferred_element_type=jnp.float32)
    h2y = h2y + b_ref[...]                       # f32 epilogue (v5e-safe)
    # Slice the padded lanes in-kernel so only the real O columns reach HBM.
    o_ref[...] = jax.nn.sigmoid(h2y[:, :out_features]).astype(o_ref.dtype)


def prepare_classifier_params(weight, bias, *, param_dtype=jnp.bfloat16,
                              lane_multiple=128):
    """One-time parameter prep (do NOT call per forward).

    weight: (O, H) PyTorch Linear layout; bias: (O,).
    Returns (w_padded: (H, O_pad) param_dtype, b_padded: (1, O_pad) f32, O)
    with O_pad a multiple of `lane_multiple` so the MXU RHS is lane-dense.
    """
    out_features, hidden = weight.shape
    o_pad = lane_multiple * pl.cdiv(out_features, lane_multiple)
    w_padded = jnp.zeros((hidden, o_pad), dtype=param_dtype)
    w_padded = w_padded.at[:, :out_features].set(weight.T.astype(param_dtype))
    b_padded = jnp.zeros((1, o_pad), dtype=jnp.float32)
    b_padded = b_padded.at[0, :out_features].set(bias.astype(jnp.float32))
    return w_padded, b_padded, out_features


def _sublane_multiple(itemsize):
    # Packed sublane tile: 8 rows for 4-byte, 16 for 2-byte, 32 for 1-byte.
    return max(8, 32 // max(int(itemsize), 1))


def _derive_tile_b(hidden, o_pad, out_features, x_itemsize, w_itemsize,
                   out_itemsize, *, vmem_budget_bytes=32 * 1024 * 1024,
                   max_tile=2048):
    """Largest batch tile whose double-buffered working set fits the budget.

    Budget targets ~half of v7x's 64 MiB VMEM; v5e/v6e (128 MiB) have slack.
    W is conservatively counted twice in case the compiler double-buffers it.
    """
    resident = 2 * hidden * o_pad * w_itemsize + 2 * o_pad * 4   # W + bias
    avail = max(vmem_budget_bytes - resident, 2 * 1024 * 1024)
    per_row = 2 * hidden * x_itemsize + 2 * out_features * out_itemsize
    return max(min(int(avail // per_row), max_tile),
               _sublane_multiple(x_itemsize))


def classifier_forward(prev_h, w_padded, b_padded, out_features, *, tile_b=None):
    """prev_h: (B, H); w_padded: (H, O_pad); b_padded: (1, O_pad) f32."""
    batch, hidden = prev_h.shape
    o_pad = w_padded.shape[1]
    out_dtype = prev_h.dtype
    x_itemsize = prev_h.dtype.itemsize
    w_itemsize = w_padded.dtype.itemsize
    out_itemsize = x_itemsize
    sublane = _sublane_multiple(x_itemsize)

    if tile_b is None:
        tile_b = _derive_tile_b(hidden, o_pad, out_features, x_itemsize,
                                w_itemsize, out_itemsize)
    if batch <= tile_b:
        tb = batch                              # one full block, no ragged edge
    else:
        tb = max((tile_b // sublane) * sublane, sublane)
    grid = (pl.cdiv(batch, tb),)

    # Explicit VMEM allowance (don't rely on the 32 MiB default when tiles are
    # derived): x/out double-buffered + W/bias (counted double-buffered).
    vmem_needed = (2 * tb * hidden * x_itemsize
                   + 2 * hidden * o_pad * w_itemsize + 2 * o_pad * 4
                   + 2 * tb * out_features * out_itemsize)
    vmem_limit = int(min(64 * 1024 * 1024,
                         max(32 * 1024 * 1024, 2 * vmem_needed)))

    # Real (un-padded) work only; sigmoid ~= exp + reciprocal.
    cost = pl.CostEstimate(
        flops=2 * batch * hidden * out_features,
        transcendentals=2 * batch * out_features,
        bytes_accessed=(batch * hidden * x_itemsize
                        + hidden * out_features * w_itemsize
                        + out_features * 4
                        + batch * out_features * out_itemsize),
    )

    kernel = functools.partial(_classifier_kernel, out_features=out_features)

    def build_call(param_pipeline_mode):
        extra = ({} if param_pipeline_mode is None
                 else {"pipeline_mode": param_pipeline_mode})
        return pl.pallas_call(
            kernel,
            out_shape=jax.ShapeDtypeStruct((batch, out_features), out_dtype),
            grid_spec=pltpu.PrefetchScalarGridSpec(
                num_scalar_prefetch=0,
                grid=grid,
                in_specs=[
                    pl.BlockSpec((tb, hidden), lambda i: (i, 0)),       # x tiles
                    pl.BlockSpec((hidden, o_pad), lambda i: (0, 0), **extra),  # W resident
                    pl.BlockSpec((1, o_pad), lambda i: (0, 0), **extra),        # bias resident
                ],
                out_specs=pl.BlockSpec((tb, out_features), lambda i: (i, 0)),
            ),
            compiler_params=pltpu.CompilerParams(
                dimension_semantics=("parallel",),      # batch tiles independent
                vmem_limit_bytes=vmem_limit,
            ),
            cost_estimate=cost,
        )

    try:
        # W / bias index_map is constant across batch tiles -> single VMEM
        # buffer for them (saves H*O_pad bytes; matters on v7x's 64 MiB).
        return build_call(pl.Buffered(1))(prev_h, w_padded, b_padded)
    except Exception:
        # Fallback if this jax build rejects pipeline_mode on the top-level
        # pipeline: default double buffering (the VMEM budget allows it).
        return build_call(None)(prev_h, w_padded, b_padded)


if __name__ == "__main__":
    # Small shapes implied by the module: hidden_size -> output_size projection.
    batch, hidden_size, output_size = 8, 32, 8
    init_weight = 0.08          # opt.init_weight-style uniform init bound

    key = jax.random.PRNGKey(0)
    k_x, k_w, k_b = jax.random.split(key, 3)

    prev_h = jax.random.normal(k_x, (batch, hidden_size), dtype=jnp.float32)
    # Deterministic uniform(-init_weight, init_weight) init (__initParameters).
    weight = jax.random.uniform(k_w, (output_size, hidden_size),
                                minval=-init_weight, maxval=init_weight,
                                dtype=jnp.float32)
    bias = jax.random.uniform(k_b, (output_size,),
                              minval=-init_weight, maxval=init_weight,
                              dtype=jnp.float32)

    # One-time parameter prep: pre-transposed, lane-padded, bf16 weight.
    w_padded, b_padded, out_features = prepare_classifier_params(
        weight, bias, param_dtype=jnp.bfloat16)

    # Activations arrive in bf16 (halves x HBM bytes); accumulation stays f32.
    x_bf16 = prev_h.astype(jnp.bfloat16)

    pred = classifier_forward(x_bf16, w_padded, b_padded, out_features)
    pred = jax.block_until_ready(pred)

    # Reference computed with the same bf16-rounded inputs in f32 math.
    ref = jax.nn.sigmoid(
        x_bf16.astype(jnp.float32)
        @ w_padded[:, :out_features].astype(jnp.float32)
        + bias)
    assert pred.shape == (batch, output_size)
    assert jnp.allclose(pred.astype(jnp.float32), ref, atol=1e-2, rtol=1e-2)

    print("KERNEL_OK")
</pallas_src>

<mosaic_0001>
module attributes {stable_mosaic.version = 11 : i64} {
  func.func @_classifier_kernel(%arg0: i32, %arg1: memref<8x32xbf16, #tpu.memory_space<vmem>>, %arg2: memref<32x128xbf16, #tpu.memory_space<vmem>>, %arg3: memref<1x128xf32, #tpu.memory_space<vmem>>, %arg4: memref<8x8xbf16, #tpu.memory_space<vmem>>) attributes {dimension_semantics = [#tpu.dimension_semantics<parallel>], iteration_bounds = array<i64: 1>, scalar_prefetch = 0 : i64, scratch_operands = 0 : i64, tpu.core_type = #tpu.core_type<tc>, window_params = [{transform_indices = @transform_0, window_bounds = array<i64: 8, 32>}, {pipeline_mode = #tpu.pipeline_mode<synchronous>, transform_indices = @transform_1, window_bounds = array<i64: 32, 128>}, {pipeline_mode = #tpu.pipeline_mode<synchronous>, transform_indices = @transform_2, window_bounds = array<i64: 1, 128>}, {transform_indices = @transform_3, window_bounds = array<i64: 8, 8>}]} {
    %c0 = arith.constant 0 : index
    %c0_0 = arith.constant 0 : index
    %0 = vector.load %arg1[%c0, %c0_0] : memref<8x32xbf16, #tpu.memory_space<vmem>>, vector<8x32xbf16>
    %c0_1 = arith.constant 0 : index
    %c0_2 = arith.constant 0 : index
    %1 = vector.load %arg2[%c0_1, %c0_2] : memref<32x128xbf16, #tpu.memory_space<vmem>>, vector<32x128xbf16>
    %cst = arith.constant dense<0.000000e+00> : vector<8x128xf32>
    %2 = tpu.matmul %0, %1, %cst {dimension_numbers = #tpu.dot_dimension_numbers<[1], [0], [0], [1], [0, 0, 1, 1], [], []>} : vector<8x32xbf16>, vector<32x128xbf16>, vector<8x128xf32> -> vector<8x128xf32>
    %c0_3 = arith.constant 0 : index
    %c0_4 = arith.constant 0 : index
    %3 = vector.load %arg3[%c0_3, %c0_4] : memref<1x128xf32, #tpu.memory_space<vmem>>, vector<1x128xf32>
    %4 = vector.broadcast %3 : vector<1x128xf32> to vector<8x128xf32>
    %5 = arith.addf %2, %4 : vector<8x128xf32>
    %6 = vector.extract_strided_slice %5 {offsets = [0, 0], sizes = [8, 8], strides = [1, 1]} : vector<8x128xf32> to vector<8x8xf32>
    %7 = arith.negf %6 : vector<8x8xf32>
    %8 = math.exp %7 : vector<8x8xf32>
    %cst_5 = arith.constant 1.000000e+00 : f32
    %9 = vector.broadcast %cst_5 : f32 to vector<8x8xf32>
    %10 = arith.addf %9, %8 : vector<8x8xf32>
    %11 = arith.divf %9, %10 : vector<8x8xf32>
    %12 = arith.truncf %11 : vector<8x8xf32> to vector<8x8xbf16>
    %c0_6 = arith.constant 0 : index
    %c0_7 = arith.constant 0 : index
    %13 = vector.load %arg4[%c0_6, %c0_7] : memref<8x8xbf16, #tpu.memory_space<vmem>>, vector<8x8xbf16>
    tpu.vector_store %arg4[%c0_6, %c0_7], %12 {strides = array<i32>} : memref<8x8xbf16, #tpu.memory_space<vmem>>, vector<8x8xbf16>,
    return
  }
  func.func @transform_0(%arg0: i32) -> (i32, i32) {
    %c0_i32 = arith.constant 0 : i32
    %c0_i32_0 = arith.constant 0 : i32
    return %arg0, %c0_i32 : i32, i32
  }
  func.func @transform_1(%arg0: i32) -> (i32, i32) {
    %c0_i32 = arith.constant 0 : i32
    %c0_i32_0 = arith.constant 0 : i32
    %c0_i32_1 = arith.constant 0 : i32
    return %c0_i32, %c0_i32_0 : i32, i32
  }
  func.func @transform_2(%arg0: i32) -> (i32, i32) {
    %c0_i32 = arith.constant 0 : i32
    %c0_i32_0 = arith.constant 0 : i32
    %c0_i32_1 = arith.constant 0 : i32
    return %c0_i32, %c0_i32_0 : i32, i32
  }
  func.func @transform_3(%arg0: i32) -> (i32, i32) {
    %c0_i32 = arith.constant 0 : i32
    %c0_i32_0 = arith.constant 0 : i32
    return %arg0, %c0_i32 : i32, i32
  }
}

module attributes {stable_mosaic.version = 11 : i64} {
  func.func @_classifier_kernel(%arg0: i32, %arg1: memref<8x32xbf16, #tpu.memory_space<vmem>>, %arg2: memref<32x128xbf16, #tpu.memory_space<vmem>>, %arg3: memref<1x128xf32, #tpu.memory_space<vmem>>, %arg4: memref<8x8xbf16, #tpu.memory_space<vmem>>) attributes {dimension_semantics = [#tpu.dimension_semantics<parallel>], iteration_bounds = array<i64: 1>, scalar_prefetch = 0 : i64, scratch_operands = 0 : i64, tpu.core_type = #tpu.core_type<tc>, window_params = [{transform_indices = @transform_0, window_bounds = array<i64: 8, 32>}, {pipeline_mode = #tpu.pipeline_mode<synchronous>, transform_indices = @transform_1, window_bounds = array<i64: 32, 128>}, {pipeline_mode = #tpu.pipeline_mode<synchronous>, transform_indices = @transform_2, window_bounds = array<i64: 1, 128>}, {transform_indices = @transform_3, window_bounds = array<i64: 8, 8>}]} {
    %c0 = arith.constant 0 : index
    %c0_0 = arith.constant 0 : index
    %0 = vector.load %arg1[%c0, %c0_0] : memref<8x32xbf16, #tpu.memory_space<vmem>>, vector<8x32xbf16>
    %c0_1 = arith.constant 0 : index
    %c0_2 = arith.constant 0 : index
    %1 = vector.load %arg2[%c0_1, %c0_2] : memref<32x128xbf16, #tpu.memory_space<vmem>>, vector<32x128xbf16>
    %cst = arith.constant dense<0.000000e+00> : vector<8x128xf32>
    %2 = tpu.matmul %0, %1, %cst {dimension_numbers = #tpu.dot_dimension_numbers<[1], [0], [0], [1], [0, 0, 1, 1], [], []>} : vector<8x32xbf16>, vector<32x128xbf16>, vector<8x128xf32> -> vector<8x128xf32>
    %c0_3 = arith.constant 0 : index
    %c0_4 = arith.constant 0 : index
    %3 = vector.load %arg3[%c0_3, %c0_4] : memref<1x128xf32, #tpu.memory_space<vmem>>, vector<1x128xf32>
    %4 = vector.broadcast %3 : vector<1x128xf32> to vector<8x128xf32>
    %5 = arith.addf %2, %4 : vector<8x128xf32>
    %6 = vector.extract_strided_slice %5 {offsets = [0, 0], sizes = [8, 8], strides = [1, 1]} : vector<8x128xf32> to vector<8x8xf32>
    %7 = arith.negf %6 : vector<8x8xf32>
    %8 = math.exp %7 : vector<8x8xf32>
    %cst_5 = arith.constant 1.000000e+00 : f32
    %9 = vector.broadcast %cst_5 : f32 to vector<8x8xf32>
    %10 = arith.addf %9, %8 : vector<8x8xf32>
    %11 = arith.divf %9, %10 : vector<8x8xf32>
    %12 = arith.truncf %11 : vector<8x8xf32> to vector<8x8xbf16>
    %c0_6 = arith.constant 0 : index
    %c0_7 = arith.constant 0 : index
    %13 = vector.load %arg4[%c0_6, %c0_7] : memref<8x8xbf16, #tpu.memory_space<vmem>>, vector<8x8xbf16>
    tpu.vector_store %arg4[%c0_6, %c0_7], %12 {strides = array<i32>} : memref<8x8xbf16, #tpu.memory_space<vmem>>, vector<8x8xbf16>,
    return
  }
  func.func @transform_0(%arg0: i32) -> (i32, i32) {
    %c0_i32 = arith.constant 0 : i32
    %c0_i32_0 = arith.constant 0 : i32
    return %arg0, %c0_i32 : i32, i32
  }
  func.func @transform_1(%arg0: i32) -> (i32, i32) {
    %c0_i32 = arith.constant 0 : i32
    %c0_i32_0 = arith.constant 0 : i32
    %c0_i32_1 = arith.constant 0 : i32
    return %c0_i32, %c0_i32_0 : i32, i32
  }
  func.func @transform_2(%arg0: i32) -> (i32, i32) {
    %c0_i32 = arith.constant 0 : i32
    %c0_i32_0 = arith.constant 0 : i32
    %c0_i32_1 = arith.constant 0 : i32
    return %c0_i32, %c0_i32_0 : i32, i32
  }
  func.func @transform_3(%arg0: i32) -> (i32, i32) {
    %c0_i32 = arith.constant 0 : i32
    %c0_i32_0 = arith.constant 0 : i32
    return %arg0, %c0_i32 : i32, i32
  }
}

</mosaic_0001>

<llo_original>
// kernel: tpu_custom_call.1
$region0: #{tpu_custom_call.1}
  #allocation0 [shape = 'u32[]', space=smem, size = 0x4, offset = 0x4, fixed_abs, tag = 'smem constant byte address 0x4 - core index']
  #allocation1 [shape = 'u32[72,128]{1,0:T(1,128)}', space=vmem, size = 0x9000, scoped, tag = 'internal scratch']
  %s0 = inlined_call_operand.hbm [shape: bf16[8,32], index: 0, kind: input, shape index: {}]
  %s1 = inlined_call_operand.hbm [shape: bf16[32,128], index: 1, kind: input, shape index: {}]
  %s2 = inlined_call_operand.vmem [shape: f32[1,128], index: 2, kind: input, shape index: {}]
  %s3 = inlined_call_operand.hbm [shape: bf16[8,8], index: 3, kind: output, shape index: {}]
  %s4 = sld [smem:[#allocation0]]
  $region30: #{tpu_custom_call.1} parent=0
    _
  %s6 = ssub.s32 1, %s4
  %s7 = scalar_select 0, %s6, %s4
  $region1: #{tpu_custom_call.1} parent=0
    #allocation2 [shape = 'u8[2048]{0}', space=vmem, size = 0x800, scoped, tag = 'input window, operand 0, single buffered']
    #allocation3 [shape = 's32[1]{0}', space=sflag, size = 0x4, scoped, tag = 'scoped memory for tpu_custom_call.1']
    #allocation4 [shape = 's32[1]{0}', space=sflag, size = 0x4, scoped, tag = 'scoped memory for tpu_custom_call.1']
    #allocation5 [shape = 'u8[8192]{0}', space=vmem, size = 0x2000, scoped, tag = 'input window, operand 1, single buffered']
    #allocation6 [shape = 's32[1]{0}', space=sflag, size = 0x4, scoped, tag = 'scoped memory for tpu_custom_call.1']
    #allocation7 [shape = 'u8[2048]{0}', space=vmem, size = 0x800, scoped, tag = 'output window, operand 0, single buffered']
    %8 = vsyncpa [#allocation3], 0
    %9 = vsyncpa [#allocation6], 0
    %10 = vsyncpa [#allocation4], 0
    // Predicated region
    $region2: #{tpu_custom_call.1} parent=1 // pred_check
      _
    $region3: #{tpu_custom_call.1} parent=1 // pred_check_branch
      %12 = sbr.rel (0) target = $region5
    $region4: #{tpu_custom_call.1} parent=1 // pred_region
      %14 = vsyncadd [#allocation3], 0
      %s16 = sshll.u32 %s0, 4
      %s17 = int_to_ptr.hbm [resolvable:$true] %s16
      %s18 = sshll.u32 [#allocation2], 4
      %s19 = int_to_ptr.vmem [resolvable:$true] %s18
      %21 = dma.hbm_to_vmem [thread:$0]  %s17, 64, %s19, [#allocation3]
    $region5: #{tpu_custom_call.1} parent=1 // pred_fallthru
      _
    // Predicated region
    $region6: #{tpu_custom_call.1} parent=1 // pred_check
      _
    $region7: #{tpu_custom_call.1} parent=1 // pred_check_branch
      %23 = sbr.rel (0) target = $region9
    $region8: #{tpu_custom_call.1} parent=1 // pred_region
      %25 = vsyncadd [#allocation6], 0
      %s26 = sshll.u32 %s1, 4
      %s27 = int_to_ptr.hbm [resolvable:$true] %s26
      %s28 = sshll.u32 [#allocation5], 4
      %s29 = int_to_ptr.vmem [resolvable:$true] %s28
      %34 = dma.hbm_to_vmem [thread:$0]  %s27, 256, %s29, [#allocation6], 64, 64, 4
    $region9: #{tpu_custom_call.1} parent=1 // pred_fallthru
      _
    // Predicated region
    $region10: #{tpu_custom_call.1} parent=1 // pred_check
      _
    $region11: #{tpu_custom_call.1} parent=1 // pred_check_branch
      %36 = sbr.rel (0) target = $region13
    $region12: #{tpu_custom_call.1} parent=1 // pred_region
      _
    $region13: #{tpu_custom_call.1} parent=1 // pred_fallthru
      _
    // Predicated region
    $region14: #{tpu_custom_call.1} parent=1 // pred_check
      _
    $region15: #{tpu_custom_call.1} parent=1 // pred_check_branch
      %38 = sbr.rel (0) target = $region17
    $region16: #{tpu_custom_call.1} parent=1 // pred_region
      %40 = dma.done [#allocation3], 64
    $region17: #{tpu_custom_call.1} parent=1 // pred_fallthru
      _
    // Predicated region
    $region18: #{tpu_custom_call.1} parent=1 // pred_check
      _
    $region19: #{tpu_custom_call.1} parent=1 // pred_check_branch
      %42 = sbr.rel (0) target = $region21
    $region20: #{tpu_custom_call.1} parent=1 // pred_region
      %44 = dma.done [#allocation6], 256
    $region21: #{tpu_custom_call.1} parent=1 // pred_fallthru
      _
    %v46 = vld [vmem:[#allocation2] sm:$0xf]
    %v47 = vld [vmem:[#allocation5] sm:$0xf]
    %v48 = vld [vmem:[#allocation5 + $0x4] sm:$0xf]
    %v49 = vld [vmem:[#allocation5 + $0x8] sm:$0xf]
    %v50 = vld [vmem:[#allocation5 + $0xc] sm:$0xf]
    %v51 = vld [vmem:[%s2] sm:$0x1]
    %v53 = vperm.slane %v51, 0
    %v59 = vunpack.c.l.b16 %v47
    %v60 = vunpack.c.l.b16 %v48
    %v61 = vunpack.c.l.b16 %v49
    %v62 = vunpack.c.l.b16 %v50
    %v63 = vpack.c.b16 %v60, %v59
    %v64 = vpack.c.b16 %v62, %v61
    %vm67 = vcmask 261120
    %v69 = vsel %vm67, %v46, 0
    %71 = vmatpush.bf16.msra.mxu0 0
    %72 = vmatpush.bf16.msra.mxu0 0
    %73 = vmatpush.bf16.msra.mxu0 0
    %74 = vmatpush.bf16.msra.mxu0 0
    %75 = vmatpush.bf16.msra.mxu0 0
    %76 = vmatpush.bf16.msra.mxu0 0
    %77 = vmatpush.bf16.msra.mxu0 %v64
    %78 = vmatpush.bf16.msra.mxu0 %v63
    %79 = vmatmul.bf16.gmra.mxu0 %v69
    %v80 = vpop.f32.mrf.mxu0
    %v81 = vadd.f32 %v53, %v80
    %v82 = vpop.f32.mrf.mxu0
    %83 = vdwg.mxu0
    %v84 = vxor.u32 %v81, 2147483648
    %v85 = vmul.f32 %v84, 1.442695
    %v86 = vpow.pop %v85
    %v87 = vadd.f32 %v86, 1.0
    %v88 = vrcp.pop %v87
    %v89 = vmul.f32 %v87, %v88
    %v90 = vsub.f32 1.0, %v89
    %v91 = vmul.f32 %v88, %v90
    %v92 = vadd.f32 %v88, %v91
    %vm93 = vweird.f32 %v87
    %vm94 = vweird.f32 %v88
    %vm95 = vmor %vm93, %vm94
    %v96 = vsel %vm95, %v88, %v92
    %v97 = vand.u32 2147483647, %v87
    %vm98 = vcmp.eq.f32.partialorder %v97, 8.507059e+37
    %v99 = vand.u32 %v87, 2147483648
    %v100 = vor.u32 1.1754944e-38, %v99
    %v101 = vsel %vm98, %v100, %v96
    %v102 = vmul.f32 1.0, %v101
    %v103 = vpack.c.bf16 %v102, %v102
    %vm104 = vcmask 60416
    %105 = vst.msk [vmem:[#allocation7] sm:$0xf] %vm104, %v103
    // Predicated region
    $region22: #{tpu_custom_call.1} parent=1 // pred_check
      _
    $region23: #{tpu_custom_call.1} parent=1 // pred_check_branch
      %107 = sbr.rel (0) target = $region25
    $region24: #{tpu_custom_call.1} parent=1 // pred_region
      %109 = vsyncadd [#allocation4], 0
      %s111 = sshll.u32 [#allocation7], 4
      %s112 = int_to_ptr.vmem [resolvable:$true] %s111
      %s113 = sshll.u32 %s3, 4
      %s114 = int_to_ptr.hbm [resolvable:$true] %s113
      %116 = dma.vmem_to_hbm [thread:$0]  %s112, 64, %s114, [#allocation4]
    $region25: #{tpu_custom_call.1} parent=1 // pred_fallthru
      _
    // Predicated region
    $region26: #{tpu_custom_call.1} parent=1 // pred_check
      _
    $region27: #{tpu_custom_call.1} parent=1 // pred_check_branch
      %118 = sbr.rel (0) target = $region29
    $region28: #{tpu_custom_call.1} parent=1 // pred_region
      %120 = dma.done [#allocation4], 64
    $region29: #{tpu_custom_call.1} parent=1 // pred_fallthru
      _
    %121 = vsyncpa [#allocation3], 1
    %122 = vsyncpa [#allocation6], 1
    %123 = vsyncpa [#allocation4], 1

// kernel: tpu_custom_call.1
$region0: #{tpu_custom_call.1}
  #allocation0 [shape = 'u32[]', space=smem, size = 0x4, offset = 0x4, fixed_abs, tag = 'smem constant byte address 0x4 - core index']
  #allocation1 [shape = 'u32[72,128]{1,0:T(1,128)}', space=vmem, size = 0x9000, scoped, tag = 'internal scratch']
  %s0 = inlined_call_operand.hbm [shape: bf16[8,32], index: 0, kind: input, shape index: {}]
  %s1 = inlined_call_operand.hbm [shape: bf16[32,128], index: 1, kind: input, shape index: {}]
  %s2 = inlined_call_operand.vmem [shape: f32[1,128], index: 2, kind: input, shape index: {}]
  %s3 = inlined_call_operand.hbm [shape: bf16[8,8], index: 3, kind: output, shape index: {}]
  %s4 = sld [smem:[#allocation0]]
  $region30: #{tpu_custom_call.1} parent=0
    _
  %s6 = ssub.s32 1, %s4
  %s7 = scalar_select 0, %s6, %s4
  $region1: #{tpu_custom_call.1} parent=0
    #allocation2 [shape = 'u8[2048]{0}', space=vmem, size = 0x800, scoped, tag = 'input window, operand 0, single buffered']
    #allocation3 [shape = 's32[1]{0}', space=sflag, size = 0x4, scoped, tag = 'scoped memory for tpu_custom_call.1']
    #allocation4 [shape = 's32[1]{0}', space=sflag, size = 0x4, scoped, tag = 'scoped memory for tpu_custom_call.1']
    #allocation5 [shape = 'u8[8192]{0}', space=vmem, size = 0x2000, scoped, tag = 'input window, operand 1, single buffered']
    #allocation6 [shape = 's32[1]{0}', space=sflag, size = 0x4, scoped, tag = 'scoped memory for tpu_custom_call.1']
    #allocation7 [shape = 'u8[2048]{0}', space=vmem, size = 0x800, scoped, tag = 'output window, operand 0, single buffered']
    %8 = vsyncpa [#allocation3], 0
    %9 = vsyncpa [#allocation6], 0
    %10 = vsyncpa [#allocation4], 0
    // Predicated region
    $region2: #{tpu_custom_call.1} parent=1 // pred_check
      _
    $region3: #{tpu_custom_call.1} parent=1 // pred_check_branch
      %12 = sbr.rel (0) target = $region5
    $region4: #{tpu_custom_call.1} parent=1 // pred_region
      %14 = vsyncadd [#allocation3], 0
      %s16 = sshll.u32 %s0, 4
      %s17 = int_to_ptr.hbm [resolvable:$true] %s16
      %s18 = sshll.u32 [#allocation2], 4
      %s19 = int_to_ptr.vmem [resolvable:$true] %s18
      %21 = dma.hbm_to_vmem [thread:$0]  %s17, 64, %s19, [#allocation3]
    $region5: #{tpu_custom_call.1} parent=1 // pred_fallthru
      _
    // Predicated region
    $region6: #{tpu_custom_call.1} parent=1 // pred_check
      _
    $region7: #{tpu_custom_call.1} parent=1 // pred_check_branch
      %23 = sbr.rel (0) target = $region9
    $region8: #{tpu_custom_call.1} parent=1 // pred_region
      %25 = vsyncadd [#allocation6], 0
      %s26 = sshll.u32 %s1, 4
      %s27 = int_to_ptr.hbm [resolvable:$true] %s26
      %s28 = sshll.u32 [#allocation5], 4
      %s29 = int_to_ptr.vmem [resolvable:$true] %s28
      %34 = dma.hbm_to_vmem [thread:$0]  %s27, 256, %s29, [#allocation6], 64, 64, 4
    $region9: #{tpu_custom_call.1} parent=1 // pred_fallthru
      _
    // Predicated region
    $region10: #{tpu_custom_call.1} parent=1 // pred_check
      _
    $region11: #{tpu_custom_call.1} parent=1 // pred_check_branch
      %36 = sbr.rel (0) target = $region13
    $region12: #{tpu_custom_call.1} parent=1 // pred_region
      _
    $region13: #{tpu_custom_call.1} parent=1 // pred_fallthru
      _
    // Predicated region
    $region14: #{tpu_custom_call.1} parent=1 // pred_check
      _
    $region15: #{tpu_custom_call.1} parent=1 // pred_check_branch
      %38 = sbr.rel (0) target = $region17
    $region16: #{tpu_custom_call.1} parent=1 // pred_region
      %40 = dma.done [#allocation3], 64
    $region17: #{tpu_custom_call.1} parent=1 // pred_fallthru
      _
    // Predicated region
    $region18: #{tpu_custom_call.1} parent=1 // pred_check
      _
    $region19: #{tpu_custom_call.1} parent=1 // pred_check_branch
      %42 = sbr.rel (0) target = $region21
    $region20: #{tpu_custom_call.1} parent=1 // pred_region
      %44 = dma.done [#allocation6], 256
    $region21: #{tpu_custom_call.1} parent=1 // pred_fallthru
      _
    %v46 = vld [vmem:[#allocation2] sm:$0xf]
    %v47 = vld [vmem:[#allocation5] sm:$0xf]
    %v48 = vld [vmem:[#allocation5 + $0x4] sm:$0xf]
    %v49 = vld [vmem:[#allocation5 + $0x8] sm:$0xf]
    %v50 = vld [vmem:[#allocation5 + $0xc] sm:$0xf]
    %v51 = vld [vmem:[%s2] sm:$0x1]
    %v53 = vperm.slane %v51, 0
    %v59 = vunpack.c.l.b16 %v47
    %v60 = vunpack.c.l.b16 %v48
    %v61 = vunpack.c.l.b16 %v49
    %v62 = vunpack.c.l.b16 %v50
    %v63 = vpack.c.b16 %v60, %v59
    %v64 = vpack.c.b16 %v62, %v61
    %vm67 = vcmask 261120
    %v69 = vsel %vm67, %v46, 0
    %71 = vmatpush.bf16.msra.mxu0 0
    %72 = vmatpush.bf16.msra.mxu0 0
    %73 = vmatpush.bf16.msra.mxu0 0
    %74 = vmatpush.bf16.msra.mxu0 0
    %75 = vmatpush.bf16.msra.mxu0 0
    %76 = vmatpush.bf16.msra.mxu0 0
    %77 = vmatpush.bf16.msra.mxu0 %v64
    %78 = vmatpush.bf16.msra.mxu0 %v63
    %79 = vmatmul.bf16.gmra.mxu0 %v69
    %v80 = vpop.f32.mrf.mxu0
    %v81 = vadd.f32 %v53, %v80
    %v82 = vpop.f32.mrf.mxu0
    %83 = vdwg.mxu0
    %v84 = vxor.u32 %v81, 2147483648
    %v85 = vmul.f32 %v84, 1.442695
    %v86 = vpow.pop %v85
    %v87 = vadd.f32 %v86, 1.0
    %v88 = vrcp.pop %v87
    %v89 = vmul.f32 %v87, %v88
    %v90 = vsub.f32 1.0, %v89
    %v91 = vmul.f32 %v88, %v90
    %v92 = vadd.f32 %v88, %v91
    %vm93 = vweird.f32 %v87
    %vm94 = vweird.f32 %v88
    %vm95 = vmor %vm93, %vm94
    %v96 = vsel %vm95, %v88, %v92
    %v97 = vand.u32 2147483647, %v87
    %vm98 = vcmp.eq.f32.partialorder %v97, 8.507059e+37
    %v99 = vand.u32 %v87, 2147483648
    %v100 = vor.u32 1.1754944e-38, %v99
    %v101 = vsel %vm98, %v100, %v96
    %v102 = vmul.f32 1.0, %v101
    %v103 = vpack.c.bf16 %v102, %v102
    %vm104 = vcmask 60416
    %105 = vst.msk [vmem:[#allocation7] sm:$0xf] %vm104, %v103
    // Predicated region
    $region22: #{tpu_custom_call.1} parent=1 // pred_check
      _
    $region23: #{tpu_custom_call.1} parent=1 // pred_check_branch
      %107 = sbr.rel (0) target = $region25
    $region24: #{tpu_custom_call.1} parent=1 // pred_region
      %109 = vsyncadd [#allocation4], 0
      %s111 = sshll.u32 [#allocation7], 4
      %s112 = int_to_ptr.vmem [resolvable:$true] %s111
      %s113 = sshll.u32 %s3, 4
      %s114 = int_to_ptr.hbm [resolvable:$true] %s113
      %116 = dma.vmem_to_hbm [thread:$0]  %s112, 64, %s114, [#allocation4]
    $region25: #{tpu_custom_call.1} parent=1 // pred_fallthru
      _
    // Predicated region
    $region26: #{tpu_custom_call.1} parent=1 // pred_check
      _
    $region27: #{tpu_custom_call.1} parent=1 // pred_check_branch
      %118 = sbr.rel (0) target = $region29
    $region28: #{tpu_custom_call.1} parent=1 // pred_region
      %120 = dma.done [#allocation4], 64
    $region29: #{tpu_custom_call.1} parent=1 // pred_fallthru
      _
    %121 = vsyncpa [#allocation3], 1
    %122 = vsyncpa [#allocation6], 1
    %123 = vsyncpa [#allocation4], 1

</llo_original>
